<compile_context>
chip_gen: v7x
topology: tpu7x:2x2x1
jax: 0.10.0
libtpu: 0.0.40
codegen_flags: <defaults>
</compile_context>

<pallas_src>
import functools

import jax
import jax.numpy as jnp
from jax.experimental import pallas as pl
from jax.experimental.pallas import tpu as pltpu


def _mp_cross_subg_kernel(a_ref, amask_ref, x_ref, xmask_ref, tmask_ref, o_ref, *, d):
    """One (batch-block, F-block) tile.

    a_ref     : (Bt, N, N)   f32   subgraph adjacency
    amask_ref : (Bt, N, N)   int8  A's mask
    x_ref     : (Bt, N, TF)  f32   2D reps, (node j, feature d) flattened on lanes
    xmask_ref : (Bt, N, N)   int8  X's mask (per (k, j), broadcast over d in-kernel)
    tmask_ref : (Bt, N, N)   int8  tarX's mask (per (i, j), broadcast over d in-kernel)
    o_ref     : (Bt, N, TF)  f32   output tile
    """
    bt, n, _ = a_ref.shape
    tf = x_ref.shape[-1]
    f0 = pl.program_id(1) * tf  # absolute offset of this F tile

    # Expansion matrix E[j, t] = 1  iff  flattened column (f0 + t) belongs to node j,
    # i.e.  j*d <= f0 + t < (j+1)*d.  Built from iota (no div), used on the MXU to
    # stretch (N, N) masks onto the (N, TF) lane layout exactly (values stay 0/1).
    jj = jax.lax.broadcasted_iota(jnp.int32, (n, tf), 0)
    tt = jax.lax.broadcasted_iota(jnp.int32, (n, tf), 1) + f0
    e = ((tt >= jj * d) & (tt < (jj + 1) * d)).astype(jnp.float32)  # (n, tf)

    # Bt is small and static -> fully unrolled loop of rank-2 MXU matmuls.
    for b in range(bt):
        # A.fill_masked(0.)
        a_b = a_ref[b] * amask_ref[b].astype(jnp.float32)                  # (n, n)
        # Broadcast X/tar masks over the feature dim via the MXU (exact 0/1 output).
        xm_b = jnp.dot(xmask_ref[b].astype(jnp.float32), e,
                       preferred_element_type=jnp.float32)                 # (n, tf)
        tm_b = jnp.dot(tmask_ref[b].astype(jnp.float32), e,
                       preferred_element_type=jnp.float32)                 # (n, tf)
        # X.fill_masked(0.)
        x_b = x_ref[b] * xm_b                                              # (n, tf)
        # out[i, f] = sum_k a[k, i] * x[k, f]  ==  A^T @ X, on the MXU.
        out_b = jax.lax.dot_general(
            a_b, x_b, (((0,), (0,)), ((), ())),
            preferred_element_type=jnp.float32)                            # (n, tf)
        # Apply the target mask (tarX.mask) -> zero-filled view of the output.
        o_ref[b] = (out_b * tm_b).astype(o_ref.dtype)


def _choose_tiles(B, N, F, *, elem_bytes=4, tile_budget_bytes=2 * 1024 * 1024):
    """Pick (batch tile Bt, feature tile TF) so each f32 data tile is ~<= 2 MiB."""
    per_batch_bytes = N * F * elem_bytes

    # Batch packing: amortize per-grid-step overhead, but keep >= 2 batch blocks when
    # B >= 2 (so v7x's two TensorCores both get parallel work), and cap the static
    # unroll at 16 batches per step.
    bt_budget = max(1, tile_budget_bytes // max(per_batch_bytes, 1))
    bt = 1 if B <= 1 else max(1, min(bt_budget, B // 2, 16))
    bt = min(bt, B)

    # F tiling: only needed when even a single batch row-block exceeds the budget.
    tf = F
    if per_batch_bytes > tile_budget_bytes and F % 128 == 0 and F > 128:
        best = None
        for cand in range(128, F, 128):
            if F % cand == 0 and N * cand * elem_bytes <= tile_budget_bytes:
                best = cand  # keep the largest fitting divisor
        tf = best if best is not None else 128
    return int(bt), int(tf)


def op_message_passing_cross_subg_2d(A, A_mask, X, X_mask, tar_mask):
    """Pallas implementation of OpMessagePassingCrossSubg2D.forward.

    A:        (B, N, N)     adjacency data
    A_mask:   (B, N, N)     bool mask of A
    X:        (B, N, N, D)  2D subgraph representations
    X_mask:   (B, N, N)     bool mask of X
    tar_mask: (B, N, N)     bool mask of tarX (output mask)
    returns:  (B, N, N, D)  float32, masked entries zero-filled
    """
    B, N, _ = A.shape
    D = X.shape[-1]
    F = N * D

    # Glue: flatten (node j, feature d) onto the lane axis; masks stay (B, N, N) int8.
    Af = A.astype(jnp.float32)
    Xf = X.astype(jnp.float32).reshape(B, N, F)
    Am = A_mask.astype(jnp.int8)
    Xm = X_mask.astype(jnp.int8)
    Tm = tar_mask.astype(jnp.int8)

    bt, tf = _choose_tiles(B, N, F)
    grid = (pl.cdiv(B, bt), F // tf)

    # A and the masks are resident across the (inner) F axis: same block index.
    spec_nn_a = pl.BlockSpec((bt, N, N), lambda bb, ff: (bb, 0, 0))
    spec_nf = pl.BlockSpec((bt, N, tf), lambda bb, ff: (bb, 0, ff))

    kernel = functools.partial(_mp_cross_subg_kernel, d=D)

    out = pl.pallas_call(
        kernel,
        out_shape=jax.ShapeDtypeStruct((B, N, F), jnp.float32),
        grid=grid,
        in_specs=[spec_nn_a, spec_nn_a, spec_nf, spec_nn_a, spec_nn_a],
        out_specs=spec_nf,
        compiler_params=pltpu.CompilerParams(
            dimension_semantics=("parallel", "parallel"),
            vmem_limit_bytes=32 * 1024 * 1024,
        ),
    )(Af, Am, Xf, Xm, Tm)

    return out.reshape(B, N, N, D)


if __name__ == "__main__":
    key = jax.random.PRNGKey(0)
    B, N, D = 2, 16, 32  # small shapes: batch=2, n=16 nodes, hidden=32

    k1, k2 = jax.random.split(key, 2)

    # Symmetric 0/1 subgraph adjacency.
    a_raw = (jax.random.uniform(k1, (B, N, N)) > 0.5).astype(jnp.float32)
    A = jnp.maximum(a_raw, jnp.swapaxes(a_raw, 1, 2))

    # 2D subgraph-node representations.
    X = jax.random.normal(k2, (B, N, N, D), dtype=jnp.float32)

    # Per-batch node counts -> (b, n, n) masks (as MaskedTensor masks would be).
    nnodes = jnp.array([N, N - 5], dtype=jnp.int32)
    idx = jnp.arange(N)
    nodemask = idx[None, :] < nnodes[:, None]                     # (B, N)
    pairmask = nodemask[:, :, None] & nodemask[:, None, :]        # (B, N, N)
    A_mask = pairmask
    X_mask = pairmask
    tar_mask = pairmask

    out = op_message_passing_cross_subg_2d(A, A_mask, X, X_mask, tar_mask)
    out = jax.block_until_ready(out)

    # Pure-JAX reference of the exact mamamm(A, 1, X, 1, tarmask, True) semantics.
    Af_ref = A * A_mask
    Xf_ref = X * X_mask[..., None]
    ref = jnp.einsum("bki,bkjd->bijd", Af_ref, Xf_ref,
                     precision=jax.lax.Precision.HIGHEST) * tar_mask[..., None]

    assert out.shape == (B, N, N, D)
    assert jnp.allclose(out, ref, atol=1e-4, rtol=1e-4)
    print("KERNEL_OK")
</pallas_src>

<mosaic_0001>
module attributes {stable_mosaic.version = 11 : i64} {
  func.func @_mp_cross_subg_kernel(%arg0: i32, %arg1: i32, %arg2: memref<1x16x16xf32, #tpu.memory_space<vmem>>, %arg3: memref<1x16x16xi8, #tpu.memory_space<vmem>>, %arg4: memref<1x16x512xf32, #tpu.memory_space<vmem>>, %arg5: memref<1x16x16xi8, #tpu.memory_space<vmem>>, %arg6: memref<1x16x16xi8, #tpu.memory_space<vmem>>, %arg7: memref<1x16x512xf32, #tpu.memory_space<vmem>>) attributes {dimension_semantics = [#tpu.dimension_semantics<parallel>, #tpu.dimension_semantics<parallel>], iteration_bounds = array<i64: 2, 1>, scalar_prefetch = 0 : i64, scratch_operands = 0 : i64, tpu.core_type = #tpu.core_type<tc>, window_params = [{transform_indices = @transform_0, window_bounds = array<i64: 1, 16, 16>}, {transform_indices = @transform_1, window_bounds = array<i64: 1, 16, 16>}, {transform_indices = @transform_2, window_bounds = array<i64: 1, 16, 512>}, {transform_indices = @transform_3, window_bounds = array<i64: 1, 16, 16>}, {transform_indices = @transform_4, window_bounds = array<i64: 1, 16, 16>}, {transform_indices = @transform_5, window_bounds = array<i64: 1, 16, 512>}]} {
    %c512_i32 = arith.constant 512 : i32
    %0 = arith.muli %arg1, %c512_i32 : i32
    %1 = tpu.iota {dimensions = array<i32: 0>} : vector<16x512xi32>
    %2 = tpu.iota {dimensions = array<i32: 1>} : vector<16x512xi32>
    %3 = vector.broadcast %0 : i32 to vector<16x512xi32>
    %4 = arith.addi %2, %3 : vector<16x512xi32>
    %c32_i32 = arith.constant 32 : i32
    %5 = vector.broadcast %c32_i32 : i32 to vector<16x512xi32>
    %6 = arith.muli %1, %5 : vector<16x512xi32>
    %7 = arith.cmpi sge, %4, %6 : vector<16x512xi32>
    %c1_i32 = arith.constant 1 : i32
    %8 = vector.broadcast %c1_i32 : i32 to vector<16x512xi32>
    %9 = arith.addi %1, %8 : vector<16x512xi32>
    %c32_i32_0 = arith.constant 32 : i32
    %10 = vector.broadcast %c32_i32_0 : i32 to vector<16x512xi32>
    %11 = arith.muli %9, %10 : vector<16x512xi32>
    %12 = arith.cmpi slt, %4, %11 : vector<16x512xi32>
    %13 = arith.andi %7, %12 : vector<16x512xi1>
    %14 = arith.extui %13 : vector<16x512xi1> to vector<16x512xi32>
    %15 = arith.sitofp %14 : vector<16x512xi32> to vector<16x512xf32>
    %c0 = arith.constant 0 : index
    %c0_1 = arith.constant 0 : index
    %c0_2 = arith.constant 0 : index
    %16 = vector.load %arg2[%c0, %c0_1, %c0_2] : memref<1x16x16xf32, #tpu.memory_space<vmem>>, vector<1x16x16xf32>
    %17 = vector.shape_cast %16 : vector<1x16x16xf32> to vector<16x16xf32>
    %c0_3 = arith.constant 0 : index
    %c0_4 = arith.constant 0 : index
    %c0_5 = arith.constant 0 : index
    %18 = vector.load %arg3[%c0_3, %c0_4, %c0_5] : memref<1x16x16xi8, #tpu.memory_space<vmem>>, vector<1x16x16xi8>
    %19 = vector.shape_cast %18 : vector<1x16x16xi8> to vector<16x16xi8>
    %20 = arith.sitofp %19 : vector<16x16xi8> to vector<16x16xf32>
    %21 = arith.mulf %17, %20 : vector<16x16xf32>
    %c0_6 = arith.constant 0 : index
    %c0_7 = arith.constant 0 : index
    %c0_8 = arith.constant 0 : index
    %22 = vector.load %arg5[%c0_6, %c0_7, %c0_8] : memref<1x16x16xi8, #tpu.memory_space<vmem>>, vector<1x16x16xi8>
    %23 = vector.shape_cast %22 : vector<1x16x16xi8> to vector<16x16xi8>
    %24 = arith.sitofp %23 : vector<16x16xi8> to vector<16x16xf32>
    %cst = arith.constant dense<0.000000e+00> : vector<16x512xf32>
    %25 = tpu.matmul %24, %15, %cst {dimension_numbers = #tpu.dot_dimension_numbers<[1], [0], [0], [1], [0, 0, 1, 1], [], []>} : vector<16x16xf32>, vector<16x512xf32>, vector<16x512xf32> -> vector<16x512xf32>
    %c0_9 = arith.constant 0 : index
    %c0_10 = arith.constant 0 : index
    %c0_11 = arith.constant 0 : index
    %26 = vector.load %arg6[%c0_9, %c0_10, %c0_11] : memref<1x16x16xi8, #tpu.memory_space<vmem>>, vector<1x16x16xi8>
    %27 = vector.shape_cast %26 : vector<1x16x16xi8> to vector<16x16xi8>
    %28 = arith.sitofp %27 : vector<16x16xi8> to vector<16x16xf32>
    %cst_12 = arith.constant dense<0.000000e+00> : vector<16x512xf32>
    %29 = tpu.matmul %28, %15, %cst_12 {dimension_numbers = #tpu.dot_dimension_numbers<[1], [0], [0], [1], [0, 0, 1, 1], [], []>} : vector<16x16xf32>, vector<16x512xf32>, vector<16x512xf32> -> vector<16x512xf32>
    %c0_13 = arith.constant 0 : index
    %c0_14 = arith.constant 0 : index
    %c0_15 = arith.constant 0 : index
    %30 = vector.load %arg4[%c0_13, %c0_14, %c0_15] : memref<1x16x512xf32, #tpu.memory_space<vmem>>, vector<1x16x512xf32>
    %31 = vector.shape_cast %30 : vector<1x16x512xf32> to vector<16x512xf32>
    %32 = arith.mulf %31, %25 : vector<16x512xf32>
    %cst_16 = arith.constant dense<0.000000e+00> : vector<16x512xf32>
    %33 = tpu.matmul %21, %32, %cst_16 {dimension_numbers = #tpu.dot_dimension_numbers<[0], [0], [1], [1], [0, 1, 1, 1], [], []>} : vector<16x16xf32>, vector<16x512xf32>, vector<16x512xf32> -> vector<16x512xf32>
    %34 = arith.mulf %33, %29 : vector<16x512xf32>
    %c0_17 = arith.constant 0 : index
    %c0_18 = arith.constant 0 : index
    %c0_19 = arith.constant 0 : index
    %35 = vector.load %arg7[%c0_17, %c0_18, %c0_19] : memref<1x16x512xf32, #tpu.memory_space<vmem>>, vector<1x16x512xf32>
    %36 = vector.shape_cast %35 : vector<1x16x512xf32> to vector<16x512xf32>
    %37 = vector.shape_cast %34 : vector<16x512xf32> to vector<1x16x512xf32>
    tpu.vector_store %arg7[%c0_17, %c0_18, %c0_19], %37 {strides = array<i32>} : memref<1x16x512xf32, #tpu.memory_space<vmem>>, vector<1x16x512xf32>,
    return
  }
  func.func @transform_0(%arg0: i32, %arg1: i32) -> (i32, i32, i32) {
    %c0_i32 = arith.constant 0 : i32
    %c0_i32_0 = arith.constant 0 : i32
    %c0_i32_1 = arith.constant 0 : i32
    return %arg0, %c0_i32, %c0_i32_0 : i32, i32, i32
  }
  func.func @transform_1(%arg0: i32, %arg1: i32) -> (i32, i32, i32) {
    %c0_i32 = arith.constant 0 : i32
    %c0_i32_0 = arith.constant 0 : i32
    %c0_i32_1 = arith.constant 0 : i32
    return %arg0, %c0_i32, %c0_i32_0 : i32, i32, i32
  }
  func.func @transform_2(%arg0: i32, %arg1: i32) -> (i32, i32, i32) {
    %c0_i32 = arith.constant 0 : i32
    %c0_i32_0 = arith.constant 0 : i32
    return %arg0, %c0_i32, %arg1 : i32, i32, i32
  }
  func.func @transform_3(%arg0: i32, %arg1: i32) -> (i32, i32, i32) {
    %c0_i32 = arith.constant 0 : i32
    %c0_i32_0 = arith.constant 0 : i32
    %c0_i32_1 = arith.constant 0 : i32
    return %arg0, %c0_i32, %c0_i32_0 : i32, i32, i32
  }
  func.func @transform_4(%arg0: i32, %arg1: i32) -> (i32, i32, i32) {
    %c0_i32 = arith.constant 0 : i32
    %c0_i32_0 = arith.constant 0 : i32
    %c0_i32_1 = arith.constant 0 : i32
    return %arg0, %c0_i32, %c0_i32_0 : i32, i32, i32
  }
  func.func @transform_5(%arg0: i32, %arg1: i32) -> (i32, i32, i32) {
    %c0_i32 = arith.constant 0 : i32
    %c0_i32_0 = arith.constant 0 : i32
    return %arg0, %c0_i32, %arg1 : i32, i32, i32
  }
}

</mosaic_0001>

<llo_original>
// kernel: tpu_custom_call.1
$region0: #{tpu_custom_call.1}
  #allocation0 [shape = 'u32[]', space=smem, size = 0x4, offset = 0x4, fixed_abs, tag = 'smem constant byte address 0x4 - core index']
  #allocation1 [shape = 'u32[144,128]{1,0:T(1,128)}', space=vmem, size = 0x12000, scoped, tag = 'internal scratch']
  %s0 = inlined_call_operand.hbm [shape: f32[2,16,16], index: 0, kind: input, shape index: {}]
  %s1 = inlined_call_operand.hbm [shape: s8[2,16,16], index: 1, kind: input, shape index: {}]
  %s2 = inlined_call_operand.hbm [shape: f32[2,16,512], index: 2, kind: input, shape index: {}]
  %s3 = inlined_call_operand.vmem [shape: s8[2,16,16], index: 3, kind: input, shape index: {}]
  %s4 = inlined_call_operand.hbm [shape: s8[2,16,16], index: 4, kind: input, shape index: {}]
  %s5 = inlined_call_operand.hbm [shape: f32[2,16,512], index: 5, kind: output, shape index: {}]
  %s6 = sld [smem:[#allocation0]]
  $region69: #{tpu_custom_call.1} parent=0
    _
  %s8 = ssub.s32 1, %s6
  %s9 = scalar_select 0, %s8, %s6
  $region1: #{tpu_custom_call.1} parent=0
    #allocation2 [shape = 'u8[16384]{0}', space=vmem, size = 0x4000, scoped, tag = 'input window, operand 0']
    #allocation3 [shape = 's32[2]{0}', space=sflag, size = 0x8, scoped, tag = 'scoped memory for tpu_custom_call.1']
    #allocation4 [shape = 's32[2]{0}', space=sflag, size = 0x8, scoped, tag = 'scoped memory for tpu_custom_call.1']
    #allocation5 [shape = 'u8[4096]{0}', space=vmem, size = 0x1000, scoped, tag = 'input window, operand 1']
    #allocation6 [shape = 's32[2]{0}', space=sflag, size = 0x8, scoped, tag = 'scoped memory for tpu_custom_call.1']
    #allocation7 [shape = 'u8[65536]{0}', space=vmem, size = 0x10000, scoped, tag = 'input window, operand 2']
    #allocation8 [shape = 'u8[4096]{0}', space=vmem, size = 0x1000, scoped, tag = 'input window, operand 4']
    #allocation9 [shape = 's32[2]{0}', space=sflag, size = 0x8, scoped, tag = 'scoped memory for tpu_custom_call.1']
    #allocation10 [shape = 'u8[65536]{0}', space=vmem, size = 0x10000, scoped, tag = 'output window, operand 0']
    %10 = vsyncpa [#allocation3], 0
    %s11 = scalar_lea.sflag [#allocation3], 1
    %12 = vsyncpa %s11, 0
    %13 = vsyncpa [#allocation6], 0
    %s14 = scalar_lea.sflag [#allocation6], 1
    %15 = vsyncpa %s14, 0
    %16 = vsyncpa [#allocation9], 0
    %s17 = scalar_lea.sflag [#allocation9], 1
    %18 = vsyncpa %s17, 0
    %19 = vsyncpa [#allocation4], 0
    %s20 = scalar_lea.sflag [#allocation4], 1
    %21 = vsyncpa %s20, 0
    loop: start=0, step=1, limit=4
    $region2: #{tpu_custom_call.1} parent=1 // loop_pre_header
      _
    $region3: #{tpu_custom_call.1} parent=1 // loop_header
      %s23 = sphi 0, %s27
      %p24 = scmp.ge.s32.totalorder %s23, 4
      %s30 = sphi 0, %s42
      %s31 = sphi 0, %s38
      %s32 = sphi 0, %s30
      %s33 = sphi 0, %s31
      %s34 = sphi 0, %s32
      %s35 = sphi 0, %s33
      %s45 = sphi 0, %s47
      %s48 = sphi 0, %s45
      %s49 = sphi 0, %s48
      %s65 = sphi 0, %s49
      %s71 = sphi 0, %s73
      %s74 = sphi 0, %s71
      %s75 = sphi 0, %s74
      %s91 = sphi 0, %s75
      %s99 = sphi 0, %s101
      %s102 = sphi 0, %s99
      %s103 = sphi 0, %s102
      %s119 = sphi 0, %s103
      %s125 = sphi 0, %s127
      %s128 = sphi 0, %s125
      %s129 = sphi 0, %s128
      %s145 = sphi 0, %s129
      %s151 = sphi 0, %s153
      %s154 = sphi 0, %s151
      %s155 = sphi 0, %s154
      %s171 = sphi 0, %s155
      %s179 = sphi 0, %s181
      %s182 = sphi 0, %s179
      %s183 = sphi 0, %s182
      %s199 = sphi 0, %s183
    $region4: #{tpu_custom_call.1} parent=1 // loop_header_branch
      %26 = sbr.rel (%p24) target = $region8
    $region5: #{tpu_custom_call.1} parent=1 // loop_body
      %s28 = ssub.s32 %s23, 1
      %s29 = ssub.s32 %s23, 2
      %s36 = sadd.s32 1, %s31
      %p37 = scmp.ge.s32.totalorder %s36, 1
      %s38 = scalar_select %p37, 0, %s36
      %s39 = sadd.s32 1, %s30
      %s40 = scalar_select %p37, %s39, %s30
      %p41 = scmp.ge.s32.totalorder %s40, 2
      %s42 = scalar_select %p41, 0, %s40
      %s43 = ssub.s32 %s30, %s42
      %p44 = scmp.eq.s32.totalorder %s43, 0
      %s46 = sadd.s32 %s45, 1
      %s47 = scalar_select %p44, %s45, %s46
      %p50 = pneg %p44
      %p51 = scmp.eq.s32.totalorder %s23, 1
      %p52 = por %p50, %p51
      %p53 = scmp.ne.s32.totalorder %s45, %s48
      %p54 = scmp.eq.s32.totalorder %s23, 0
      %p55 = por %p53, %p54
      %p56 = scmp.ne.s32.totalorder %s45, %s48
      %p57 = scmp.eq.s32.totalorder %s28, 1
      %p58 = por %p56, %p57
      %p59 = scmp.ne.s32.totalorder %s48, %s49
      %p60 = scmp.eq.s32.totalorder %s28, 0
      %p61 = por %p59, %p60
      %p62 = scmp.ne.s32.totalorder %s48, %s49
      %p63 = scmp.eq.s32.totalorder %s29, 1
      %p64 = por %p62, %p63
      %p66 = scmp.ne.s32.totalorder %s49, %s65
      %p67 = scmp.eq.s32.totalorder %s29, 0
      %p68 = por %p66, %p67
      %s69 = ssub.s32 %s30, %s42
      %p70 = scmp.eq.s32.totalorder %s69, 0
      %s72 = sadd.s32 %s71, 1
      %s73 = scalar_select %p70, %s71, %s72
      %p76 = pneg %p70
      %p77 = scmp.eq.s32.totalorder %s23, 1
      %p78 = por %p76, %p77
      %p79 = scmp.ne.s32.totalorder %s71, %s74
      %p80 = scmp.eq.s32.totalorder %s23, 0
      %p81 = por %p79, %p80
      %p82 = scmp.ne.s32.totalorder %s71, %s74
      %p83 = scmp.eq.s32.totalorder %s28, 1
      %p84 = por %p82, %p83
      %p85 = scmp.ne.s32.totalorder %s74, %s75
      %p86 = scmp.eq.s32.totalorder %s28, 0
      %p87 = por %p85, %p86
      %p88 = scmp.ne.s32.totalorder %s74, %s75
      %p89 = scmp.eq.s32.totalorder %s29, 1
      %p90 = por %p88, %p89
      %p92 = scmp.ne.s32.totalorder %s75, %s91
      %p93 = scmp.eq.s32.totalorder %s29, 0
      %p94 = por %p92, %p93
      %s95 = ssub.s32 %s30, %s42
      %s96 = ssub.s32 %s31, %s38
      %s97 = sor.u32 %s95, %s96
      %p98 = scmp.eq.s32.totalorder %s97, 0
      %s100 = sadd.s32 %s99, 1
      %s101 = scalar_select %p98, %s99, %s100
      %p104 = pneg %p98
      %p105 = scmp.eq.s32.totalorder %s23, 1
      %p106 = por %p104, %p105
      %p107 = scmp.ne.s32.totalorder %s99, %s102
      %p108 = scmp.eq.s32.totalorder %s23, 0
      %p109 = por %p107, %p108
      %p110 = scmp.ne.s32.totalorder %s99, %s102
      %p111 = scmp.eq.s32.totalorder %s28, 1
      %p112 = por %p110, %p111
      %p113 = scmp.ne.s32.totalorder %s102, %s103
      %p114 = scmp.eq.s32.totalorder %s28, 0
      %p115 = por %p113, %p114
      %p116 = scmp.ne.s32.totalorder %s102, %s103
      %p117 = scmp.eq.s32.totalorder %s29, 1
      %p118 = por %p116, %p117
      %p120 = scmp.ne.s32.totalorder %s103, %s119
      %p121 = scmp.eq.s32.totalorder %s29, 0
      %p122 = por %p120, %p121
      %s123 = ssub.s32 %s30, %s42
      %p124 = scmp.eq.s32.totalorder %s123, 0
      %s126 = sadd.s32 %s125, 1
      %s127 = scalar_select %p124, %s125, %s126
      %p130 = pneg %p124
      %p131 = scmp.eq.s32.totalorder %s23, 1
      %p132 = por %p130, %p131
      %p133 = scmp.ne.s32.totalorder %s125, %s128
      %p134 = scmp.eq.s32.totalorder %s23, 0
      %p135 = por %p133, %p134
      %p136 = scmp.ne.s32.totalorder %s125, %s128
      %p137 = scmp.eq.s32.totalorder %s28, 1
      %p138 = por %p136, %p137
      %p139 = scmp.ne.s32.totalorder %s128, %s129
      %p140 = scmp.eq.s32.totalorder %s28, 0
      %p141 = por %p139, %p140
      %p142 = scmp.ne.s32.totalorder %s128, %s129
      %p143 = scmp.eq.s32.totalorder %s29, 1
      %p144 = por %p142, %p143
      %p146 = scmp.ne.s32.totalorder %s129, %s145
      %p147 = scmp.eq.s32.totalorder %s29, 0
      %p148 = por %p146, %p147
      %s149 = ssub.s32 %s30, %s42
      %p150 = scmp.eq.s32.totalorder %s149, 0
      %s152 = sadd.s32 %s151, 1
      %s153 = scalar_select %p150, %s151, %s152
      %p156 = pneg %p150
      %p157 = scmp.eq.s32.totalorder %s23, 1
      %p158 = por %p156, %p157
      %p159 = scmp.ne.s32.totalorder %s151, %s154
      %p160 = scmp.eq.s32.totalorder %s23, 0
      %p161 = por %p159, %p160
      %p162 = scmp.ne.s32.totalorder %s151, %s154
      %p163 = scmp.eq.s32.totalorder %s28, 1
      %p164 = por %p162, %p163
      %p165 = scmp.ne.s32.totalorder %s154, %s155
      %p166 = scmp.eq.s32.totalorder %s28, 0
      %p167 = por %p165, %p166
      %p168 = scmp.ne.s32.totalorder %s154, %s155
      %p169 = scmp.eq.s32.totalorder %s29, 1
      %p170 = por %p168, %p169
      %p172 = scmp.ne.s32.totalorder %s155, %s171
      %p173 = scmp.eq.s32.totalorder %s29, 0
      %p174 = por %p172, %p173
      %s175 = ssub.s32 %s30, %s42
      %s176 = ssub.s32 %s31, %s38
      %s177 = sor.u32 %s175, %s176
      %p178 = scmp.eq.s32.totalorder %s177, 0
      %s180 = sadd.s32 %s179, 1
      %s181 = scalar_select %p178, %s179, %s180
      %p184 = pneg %p178
      %p185 = scmp.eq.s32.totalorder %s23, 1
      %p186 = por %p184, %p185
      %p187 = scmp.ne.s32.totalorder %s179, %s182
      %p188 = scmp.eq.s32.totalorder %s23, 0
      %p189 = por %p187, %p188
      %p190 = scmp.ne.s32.totalorder %s179, %s182
      %p191 = scmp.eq.s32.totalorder %s28, 1
      %p192 = por %p190, %p191
      %p193 = scmp.ne.s32.totalorder %s182, %s183
      %p194 = scmp.eq.s32.totalorder %s28, 0
      %p195 = por %p193, %p194
      %p196 = scmp.ne.s32.totalorder %s182, %s183
      %p197 = scmp.eq.s32.totalorder %s29, 1
      %p198 = por %p196, %p197
      %p200 = scmp.ne.s32.totalorder %s183, %s199
      %p201 = scmp.eq.s32.totalorder %s29, 0
      %p202 = por %p200, %p201
      %p203 = scmp.le.s32.totalorder 1, %s23
      %p204 = scmp.lt.s32.totalorder %s23, 3
      %p205 = pnand %p203, %p204
      %p206 = pneg %p205
      // Predicated region
      $region9: #{tpu_custom_call.1} parent=5 // pred_check
        _
      $region10: #{tpu_custom_call.1} parent=5 // pred_check_branch
        %208 = sbr.rel (%p205) target = $region12
      $region11: #{tpu_custom_call.1} parent=5 // pred_region
        %s209 = ssub.s32 %s23, 1
      $region12: #{tpu_custom_call.1} parent=5 // pred_fallthru
        _
      %p210 = scmp.lt.s32.totalorder %s23, 2
      // Predicated region
      $region13: #{tpu_custom_call.1} parent=5 // pred_check
        %p211 = pneg %p210
      $region14: #{tpu_custom_call.1} parent=5 // pred_check_branch
        %213 = sbr.rel (%p211) target = $region16
      $region15: #{tpu_custom_call.1} parent=5 // pred_region
        // Predicated region
        $region17: #{tpu_custom_call.1} parent=15 // pred_check
          %p214 = pneg %p55
        $region18: #{tpu_custom_call.1} parent=15 // pred_check_branch
          %216 = sbr.rel (%p214) target = $region20
        $region19: #{tpu_custom_call.1} parent=15 // pred_region
          %s217 = sand.u32 %s45, 1
          %s218 = scalar_lea.sflag [#allocation3], %s217
          %s219 = sand.u32 %s45, 1
          %s220 = smul.addr %s219, 16
          %s221 = scalar_lea.vmem [#allocation2], %s220
          %s223 = ssub.s32 256, 256
          %224 = vsyncadd %s218, %s223
          %s225 = smul.addr %s30, 2
          %s226 = smul.addr %s225, 128
          %s227 = scalar_lea.hbm %s0, %s226
          %s228 = sshll.u32 %s221, 4
          %s229 = int_to_ptr.vmem [resolvable:$true] %s228
          %234 = dma.hbm_to_vmem [thread:$0]  %s227, 256, %s229, %s218, 128, 128, 8
        $region20: #{tpu_custom_call.1} parent=15 // pred_fallthru
          _
        // Predicated region
        $region21: #{tpu_custom_call.1} parent=15 // pred_check
          %p235 = pneg %p81
        $region22: #{tpu_custom_call.1} parent=15 // pred_check_branch
          %237 = sbr.rel (%p235) target = $region24
        $region23: #{tpu_custom_call.1} parent=15 // pred_region
          %s238 = sand.u32 %s23, 1
          %s239 = scalar_lea.sflag [#allocation6], %s238
          %s240 = sand.u32 %s71, 1
          %s241 = smul.addr %s240, 4
          %s242 = scalar_lea.vmem [#allocation5], %s241
          %s244 = ssub.s32 64, 64
          %245 = vsyncadd %s239, %s244
          %s246 = smul.addr %s30, 2
          %s247 = smul.addr %s246, 32
          %s248 = scalar_lea.hbm %s1, %s247
          %s249 = sshll.u32 %s242, 4
          %s250 = int_to_ptr.vmem [resolvable:$true] %s249
          %255 = dma.hbm_to_vmem [thread:$0]  %s248, 64, %s250, %s239, 32, 32, 2
        $region24: #{tpu_custom_call.1} parent=15 // pred_fallthru
          _
        // Predicated region
        $region25: #{tpu_custom_call.1} parent=15 // pred_check
          %p256 = pneg %p109
        $region26: #{tpu_custom_call.1} parent=15 // pred_check_branch
          %258 = sbr.rel (%p256) target = $region28
        $region27: #{tpu_custom_call.1} parent=15 // pred_region
          %s259 = sand.u32 %s23, 1
          %s260 = scalar_lea.sflag [#allocation6], %s259
          %s261 = sand.u32 %s99, 1
          %s262 = smul.addr %s261, 64
          %s263 = scalar_lea.vmem [#allocation7], %s262
          %s264 = smul.u32 4, %s31
          %s266 = ssub.s32 1024, 1024
          %267 = vsyncadd %s260, %s266
          %s268 = smul.addr %s30, 8
          %s269 = sadd.s32 %s264, %s268
          %s270 = smul.addr %s269, 128
          %s271 = scalar_lea.hbm %s2, %s270
          %s272 = sshll.u32 %s263, 4
          %s273 = int_to_ptr.vmem [resolvable:$true] %s272
          %278 = dma.hbm_to_vmem [thread:$0]  %s271, 1024, %s273, %s260, 512, 512, 32
        $region28: #{tpu_custom_call.1} parent=15 // pred_fallthru
          _
        // Predicated region
        $region29: #{tpu_custom_call.1} parent=15 // pred_check
          %p279 = pneg %p135
        $region30: #{tpu_custom_call.1} parent=15 // pred_check_branch
          %281 = sbr.rel (%p279) target = $region32
        $region31: #{tpu_custom_call.1} parent=15 // pred_region
          %p282 = scmp.lt.s32.totalorder %s30, 1
          %s283 = scalar_select %p282, %s30, 1
          %s284 = smul.addr %s283, 2
          %s285 = smul.addr %s284, 2
          %s286 = scalar_lea.vmem %s3, %s285
        $region32: #{tpu_custom_call.1} parent=15 // pred_fallthru
          _
        // Predicated region
        $region33: #{tpu_custom_call.1} parent=15 // pred_check
          %p287 = pneg %p161
        $region34: #{tpu_custom_call.1} parent=15 // pred_check_branch
          %289 = sbr.rel (%p287) target = $region36
        $region35: #{tpu_custom_call.1} parent=15 // pred_region
          %s290 = sand.u32 %s151, 1
          %s291 = scalar_lea.sflag [#allocation9], %s290
          %s292 = sand.u32 %s151, 1
          %s293 = smul.addr %s292, 4
          %s294 = scalar_lea.vmem [#allocation8], %s293
          %s296 = ssub.s32 64, 64
          %297 = vsyncadd %s291, %s296
          %s298 = smul.addr %s30, 2
          %s299 = smul.addr %s298, 32
          %s300 = scalar_lea.hbm %s4, %s299
          %s301 = sshll.u32 %s294, 4
          %s302 = int_to_ptr.vmem [resolvable:$true] %s301
          %307 = dma.hbm_to_vmem [thread:$0]  %s300, 64, %s302, %s291, 32, 32, 2
        $region36: #{tpu_custom_call.1} parent=15 // pred_fallthru
          _
      $region16: #{tpu_custom_call.1} parent=5 // pred_fallthru
        _
      %p308 = scmp.le.s32.totalorder 1, %s23
      %p309 = scmp.lt.s32.totalorder %s23, 3
      %p310 = pnand %p308, %p309
      %p311 = pneg %p310
      // Predicated region
      $region37: #{tpu_custom_call.1} parent=5 // pred_check
        _
      $region38: #{tpu_custom_call.1} parent=5 // pred_check_branch
        %313 = sbr.rel (%p310) target = $region40
      $region39: #{tpu_custom_call.1} parent=5 // pred_region
        %s314 = ssub.s32 %s23, 1
        %s315 = sand.u32 %s48, 1
        %s316 = scalar_lea.sflag [#allocation3], %s315
        %s317 = sand.u32 %s48, 1
        %s318 = smul.addr %s317, 16
        %s319 = scalar_lea.vmem [#allocation2], %s318
        // Predicated region
        $region41: #{tpu_custom_call.1} parent=39 // pred_check
          %p320 = pneg %p61
        $region42: #{tpu_custom_call.1} parent=39 // pred_check_branch
          %322 = sbr.rel (%p320) target = $region44
        $region43: #{tpu_custom_call.1} parent=39 // pred_region
          %323 = dma.done %s316, 256
        $region44: #{tpu_custom_call.1} parent=39 // pred_fallthru
          _
        %s324 = sand.u32 %s28, 1
        %s325 = scalar_lea.sflag [#allocation6], %s324
        %s326 = sand.u32 %s74, 1
        %s327 = smul.addr %s326, 4
        %s328 = scalar_lea.vmem [#allocation5], %s327
        // Predicated region
        $region45: #{tpu_custom_call.1} parent=39 // pred_check
          %p329 = pneg %p87
        $region46: #{tpu_custom_call.1} parent=39 // pred_check_branch
          %331 = sbr.rel (%p329) target = $region48
        $region47: #{tpu_custom_call.1} parent=39 // pred_region
          %332 = dma.done %s325, 64
        $region48: #{tpu_custom_call.1} parent=39 // pred_fallthru
          _
        %s333 = sand.u32 %s28, 1
        %s334 = scalar_lea.sflag [#allocation6], %s333
        %s335 = sand.u32 %s102, 1
        %s336 = smul.addr %s335, 64
        %s337 = scalar_lea.vmem [#allocation7], %s336
        // Predicated region
        $region49: #{tpu_custom_call.1} parent=39 // pred_check
          %p338 = pneg %p115
        $region50: #{tpu_custom_call.1} parent=39 // pred_check_branch
          %340 = sbr.rel (%p338) target = $region52
        $region51: #{tpu_custom_call.1} parent=39 // pred_region
          %341 = dma.done %s334, 1024
        $region52: #{tpu_custom_call.1} parent=39 // pred_fallthru
          _
        %s342 = sand.u32 %s154, 1
        %s343 = scalar_lea.sflag [#allocation9], %s342
        %s344 = sand.u32 %s154, 1
        %s345 = smul.addr %s344, 4
        %s346 = scalar_lea.vmem [#allocation8], %s345
        // Predicated region
        $region53: #{tpu_custom_call.1} parent=39 // pred_check
          %p347 = pneg %p167
        $region54: #{tpu_custom_call.1} parent=39 // pred_check_branch
          %349 = sbr.rel (%p347) target = $region56
        $region55: #{tpu_custom_call.1} parent=39 // pred_region
          %350 = dma.done %s343, 64
        $region56: #{tpu_custom_call.1} parent=39 // pred_fallthru
          _
        %s351 = sand.u32 %s48, 1
        %s352 = scalar_lea.sflag [#allocation3], %s351
        %s353 = sand.u32 %s48, 1
        %s354 = smul.addr %s353, 16
        %s355 = scalar_lea.vmem [#allocation2], %s354
        %p356 = pneg %p61
        %p357 = pneg %p58
        %s358 = sand.u32 %s28, 1
        %s359 = scalar_lea.sflag [#allocation6], %s358
        %s360 = sand.u32 %s74, 1
        %s361 = smul.addr %s360, 4
        %s362 = scalar_lea.vmem [#allocation5], %s361
        %p363 = pneg %p87
        %p364 = pneg %p84
        %s365 = sand.u32 %s28, 1
        %s366 = scalar_lea.sflag [#allocation6], %s365
        %s367 = sand.u32 %s102, 1
        %s368 = smul.addr %s367, 64
        %s369 = scalar_lea.vmem [#allocation7], %s368
        %p370 = pneg %p115
        %p371 = pneg %p112
        %p372 = scmp.lt.s32.totalorder %s32, 1
        %s373 = scalar_select %p372, %s32, 1
        %s374 = smul.addr %s373, 2
        %s375 = smul.addr %s374, 2
        %s376 = scalar_lea.vmem %s3, %s375
        %p377 = pneg %p141
        %p378 = pneg %p138
        %s379 = sand.u32 %s154, 1
        %s380 = scalar_lea.sflag [#allocation9], %s379
        %s381 = sand.u32 %s154, 1
        %s382 = smul.addr %s381, 4
        %s383 = scalar_lea.vmem [#allocation8], %s382
        %p384 = pneg %p167
        %p385 = pneg %p164
        %p386 = pneg %p195
        %p387 = pneg %p192
        %s388 = sand.u32 %s182, 1
        %s389 = scalar_lea.sflag [#allocation4], %s388
        %s390 = sand.u32 %s182, 1
        %s391 = smul.addr %s390, 64
        %s392 = scalar_lea.vmem [#allocation10], %s391
        %s393 = smul.u32 4, %s33
        %p394 = scmp.lt.s32.totalorder %s32, 1
        %s395 = scalar_select %p394, %s32, 1
        %s396 = smul.addr %s395, 2
        %s397 = smul.addr %s396, 2
        %s398 = scalar_lea.vmem %s3, %s397
        %s399 = smul.u32 4, %s33
        %s400 = smul.u32 %s33, 512
        %v401 = vlaneseq
        %v402 = vshrl.u32 %v401, 7
        %v403 = vadd.s32 %v402, 8
        %v404 = vlaneseq
        %v405 = vand.u32 %v404, 127
        %v406 = vadd.s32 %v405, 128
        %v407 = vadd.s32 %v405, 256
        %v408 = vadd.s32 %v405, 384
        %v409 = vstv %s400
        %v410 = vadd.s32 %v405, %v409
        %v411 = vadd.s32 %v406, %v409
        %v412 = vadd.s32 %v407, %v409
        %v413 = vadd.s32 %v408, %v409
        %v414 = vmul.u32 %v402, 32
        %v415 = vmul.u32 %v403, 32
        %vm416 = vcmp.ge.s32.totalorder %v410, %v414
        %vm417 = vcmp.ge.s32.totalorder %v411, %v414
        %vm418 = vcmp.ge.s32.totalorder %v412, %v414
        %vm419 = vcmp.ge.s32.totalorder %v413, %v414
        %vm420 = vcmp.ge.s32.totalorder %v410, %v415
        %vm421 = vcmp.ge.s32.totalorder %v411, %v415
        %vm422 = vcmp.ge.s32.totalorder %v412, %v415
        %vm423 = vcmp.ge.s32.totalorder %v413, %v415
        %v424 = vadd.s32 %v402, 1
        %v425 = vadd.s32 %v403, 1
        %v426 = vmul.u32 %v424, 32
        %v427 = vmul.u32 %v425, 32
        %vm428 = vcmp.lt.s32.totalorder %v410, %v426
        %vm429 = vcmp.lt.s32.totalorder %v411, %v426
        %vm430 = vcmp.lt.s32.totalorder %v412, %v426
        %vm431 = vcmp.lt.s32.totalorder %v413, %v426
        %vm432 = vcmp.lt.s32.totalorder %v410, %v427
        %vm433 = vcmp.lt.s32.totalorder %v411, %v427
        %vm434 = vcmp.lt.s32.totalorder %v412, %v427
        %vm435 = vcmp.lt.s32.totalorder %v413, %v427
        %vm436 = vmand %vm416, %vm428
        %vm437 = vmand %vm417, %vm429
        %vm438 = vmand %vm418, %vm430
        %vm439 = vmand %vm419, %vm431
        %vm440 = vmand %vm420, %vm432
        %vm441 = vmand %vm421, %vm433
        %vm442 = vmand %vm422, %vm434
        %vm443 = vmand %vm423, %vm435
        %v444 = vsel %vm436, 1, 0
        %v445 = vsel %vm437, 1, 0
        %v446 = vsel %vm438, 1, 0
        %v447 = vsel %vm439, 1, 0
        %v448 = vsel %vm440, 1, 0
        %v449 = vsel %vm441, 1, 0
        %v450 = vsel %vm442, 1, 0
        %v451 = vsel %vm443, 1, 0
        %v452 = vcvt.s32.f32 %v444
        %v453 = vcvt.s32.f32 %v445
        %v454 = vcvt.s32.f32 %v446
        %v455 = vcvt.s32.f32 %v447
        %v456 = vcvt.s32.f32 %v448
        %v457 = vcvt.s32.f32 %v449
        %v458 = vcvt.s32.f32 %v450
        %v459 = vcvt.s32.f32 %v451
        %v460 = vld [vmem:[%s319] sm:$0xff]
        %v461 = vld [vmem:[%s319 + $0x8] sm:$0xff]
        %v462 = vld [vmem:[%s328] sm:$0x3]
        %v463 = vld [vmem:[%s328 + $0x2] sm:$0x3]
        %v464 = vunpack.c.0.s8 %v462
        %v465 = vunpack.c.0.s8 %v463
        %v466 = vcvt.s32.f32 %v464
        %v467 = vcvt.s32.f32 %v465
        %v468 = vmul.f32 %v460, %v466
        %v469 = vmul.f32 %v461, %v467
        %v470 = vld [vmem:[%s398] sm:$0x3]
        %v471 = vld [vmem:[%s398 + $0x2] sm:$0x3]
        %v472 = vunpack.c.0.s8 %v470
        %v473 = vunpack.c.0.s8 %v471
        %v474 = vcvt.s32.f32 %v472
        %v475 = vcvt.s32.f32 %v473
        %vm476 = vcmask 130048
        %v478 = vsel %vm476, %v474, 0
        %v481 = vsel %vm476, %v475, 0
        %483 = vmatprep.subr.mxu0 %v453
        %484 = vmatpush1.msra.mxu0 %v452
        %485 = vmatprep.subr.mxu0 %v457
        %486 = vmatpush1.msra.mxu0 %v456
        %487 = vmatprep.subr.mxu0 0.0
        %488 = vmatpush1.msra.mxu0 0.0
        %489 = vmatprep.subr.mxu0 0.0
        %490 = vmatpush1.msra.mxu0 0.0
        %491 = vmatprep.subr.mxu0 0.0
        %492 = vmatpush1.msra.mxu0 0.0
        %493 = vmatprep.subr.mxu0 0.0
        %494 = vmatpush1.msra.mxu0 0.0
        %495 = vmatprep.subr.mxu0 0.0
        %496 = vmatpush1.msra.mxu0 0.0
        %497 = vmatprep.subr.mxu0 0.0
        %498 = vmatpush1.msra.mxu0 0.0
        %499 = vmatprep.subr.mxu0 0.0
        %500 = vmatpush1.msra.mxu0 0.0
        %501 = vmatprep.subr.mxu0 0.0
        %502 = vmatpush1.msra.mxu0 0.0
        %503 = vmatprep.subr.mxu0 0.0
        %504 = vmatpush1.msra.mxu0 0.0
        %505 = vmatprep.subr.mxu0 0.0
        %506 = vmatpush1.msra.mxu0 0.0
        %507 = vmatprep.subr.mxu0 0.0
        %508 = vmatpush1.msra.mxu0 0.0
        %509 = vmatprep.subr.mxu0 0.0
        %510 = vmatpush1.msra.mxu0 0.0
        %511 = vmatprep.subr.mxu0 0.0
        %512 = vmatpush1.msra.mxu0 0.0
        %513 = vmatprep.subr.mxu0 0.0
        %514 = vmatpush1.msra.mxu0 0.0
        %515 = vmatprep.subr.mxu0 0.0
        %516 = vmatpush1.msra.mxu0 0.0
        %517 = vmatprep.subr.mxu0 0.0
        %518 = vmatpush1.msra.mxu0 0.0
        %519 = vmatprep.subr.mxu0 0.0
        %520 = vmatpush1.msra.mxu0 0.0
        %521 = vmatprep.subr.mxu0 0.0
        %522 = vmatpush1.msra.mxu0 0.0
        %523 = vmatprep.subr.mxu0 0.0
        %524 = vmatpush1.msra.mxu0 0.0
        %525 = vmatprep.subr.mxu0 0.0
        %526 = vmatpush1.msra.mxu0 0.0
        %527 = vmatprep.subr.mxu0 0.0
        %528 = vmatpush1.msra.mxu0 0.0
        %529 = vmatprep.subr.mxu0 0.0
        %530 = vmatpush1.msra.mxu0 0.0
        %531 = vmatprep.subr.mxu0 0.0
        %532 = vmatpush1.msra.mxu0 0.0
        %533 = vmatprep.subr.mxu0 0.0
        %534 = vmatpush1.msra.mxu0 0.0
        %535 = vmatprep.subr.mxu0 0.0
        %536 = vmatpush1.msra.mxu0 0.0
        %537 = vmatprep.subr.mxu0 0.0
        %538 = vmatpush1.msra.mxu0 0.0
        %539 = vmatprep.subr.mxu0 0.0
        %540 = vmatpush1.msra.mxu0 0.0
        %541 = vmatprep.subr.mxu0 0.0
        %542 = vmatpush1.msra.mxu0 0.0
        %543 = vmatprep.subr.mxu0 0.0
        %544 = vmatpush1.msra.mxu0 0.0
        %545 = vmatprep.subr.mxu0 0.0
        %546 = vmatpush1.msra.mxu0 0.0
        %547 = vmatprep.mubr.f32.mxu0 0.0
        %548 = vmatmul.mubr.f32.gmra.mrb[0].mxu0 %v478
        %v549 = vpop.f32.mrb[0].mxu0
        %v550 = vadd.f32 0.0, %v549
        %v551 = vpop.f32.mrb[0].mxu0
        %v552 = vadd.f32 0.0, %v551
        %553 = vmatprep.mubr.f32.mxu0 0.0
        %554 = vmatmul.mubr.f32.gmra.mrb[0].mxu0 %v481
        %v555 = vpop.f32.mrb[0].mxu0
        %v556 = vadd.f32 0.0, %v555
        %v557 = vpop.f32.mrb[0].mxu0
        %v558 = vadd.f32 0.0, %v557
        %559 = vdwg.mxu0
        %560 = vmatprep.subr.mxu0 %v455
        %561 = vmatpush1.msra.mxu0 %v454
        %562 = vmatprep.subr.mxu0 %v459
        %563 = vmatpush1.msra.mxu0 %v458
        %564 = vmatprep.subr.mxu0 0.0
        %565 = vmatpush1.msra.mxu0 0.0
        %566 = vmatprep.subr.mxu0 0.0
        %567 = vmatpush1.msra.mxu0 0.0
        %568 = vmatprep.subr.mxu0 0.0
        %569 = vmatpush1.msra.mxu0 0.0
        %570 = vmatprep.subr.mxu0 0.0
        %571 = vmatpush1.msra.mxu0 0.0
        %572 = vmatprep.subr.mxu0 0.0
        %573 = vmatpush1.msra.mxu0 0.0
        %574 = vmatprep.subr.mxu0 0.0
        %575 = vmatpush1.msra.mxu0 0.0
        %576 = vmatprep.subr.mxu0 0.0
        %577 = vmatpush1.msra.mxu0 0.0
        %578 = vmatprep.subr.mxu0 0.0
        %579 = vmatpush1.msra.mxu0 0.0
        %580 = vmatprep.subr.mxu0 0.0
        %581 = vmatpush1.msra.mxu0 0.0
        %582 = vmatprep.subr.mxu0 0.0
        %583 = vmatpush1.msra.mxu0 0.0
        %584 = vmatprep.subr.mxu0 0.0
        %585 = vmatpush1.msra.mxu0 0.0
        %586 = vmatprep.subr.mxu0 0.0
        %587 = vmatpush1.msra.mxu0 0.0
        %588 = vmatprep.subr.mxu0 0.0
        %589 = vmatpush1.msra.mxu0 0.0
        %590 = vmatprep.subr.mxu0 0.0
        %591 = vmatpush1.msra.mxu0 0.0
        %592 = vmatprep.subr.mxu0 0.0
        %593 = vmatpush1.msra.mxu0 0.0
        %594 = vmatprep.subr.mxu0 0.0
        %595 = vmatpush1.msra.mxu0 0.0
        %596 = vmatprep.subr.mxu0 0.0
        %597 = vmatpush1.msra.mxu0 0.0
        %598 = vmatprep.subr.mxu0 0.0
        %599 = vmatpush1.msra.mxu0 0.0
        %600 = vmatprep.subr.mxu0 0.0
        %601 = vmatpush1.msra.mxu0 0.0
        %602 = vmatprep.subr.mxu0 0.0
        %603 = vmatpush1.msra.mxu0 0.0
        %604 = vmatprep.subr.mxu0 0.0
        %605 = vmatpush1.msra.mxu0 0.0
        %606 = vmatprep.subr.mxu0 0.0
        %607 = vmatpush1.msra.mxu0 0.0
        %608 = vmatprep.subr.mxu0 0.0
        %609 = vmatpush1.msra.mxu0 0.0
        %610 = vmatprep.subr.mxu0 0.0
        %611 = vmatpush1.msra.mxu0 0.0
        %612 = vmatprep.subr.mxu0 0.0
        %613 = vmatpush1.msra.mxu0 0.0
        %614 = vmatprep.subr.mxu0 0.0
        %615 = vmatpush1.msra.mxu0 0.0
        %616 = vmatprep.subr.mxu0 0.0
        %617 = vmatpush1.msra.mxu0 0.0
        %618 = vmatprep.subr.mxu0 0.0
        %619 = vmatpush1.msra.mxu0 0.0
        %620 = vmatprep.subr.mxu0 0.0
        %621 = vmatpush1.msra.mxu0 0.0
        %622 = vmatprep.subr.mxu0 0.0
        %623 = vmatpush1.msra.mxu0 0.0
        %624 = vmatprep.mubr.f32.mxu0 0.0
        %625 = vmatmul.mubr.f32.gmra.mrb[0].mxu0 %v478
        %v626 = vpop.f32.mrb[0].mxu0
        %v627 = vadd.f32 0.0, %v626
        %v628 = vpop.f32.mrb[0].mxu0
        %v629 = vadd.f32 0.0, %v628
        %630 = vmatprep.mubr.f32.mxu0 0.0
        %631 = vmatmul.mubr.f32.gmra.mrb[0].mxu0 %v481
        %v632 = vpop.f32.mrb[0].mxu0
        %v633 = vadd.f32 0.0, %v632
        %v634 = vpop.f32.mrb[0].mxu0
        %v635 = vadd.f32 0.0, %v634
        %636 = vdwg.mxu0
        %v637 = vld [vmem:[%s346] sm:$0x3]
        %v638 = vld [vmem:[%s346 + $0x2] sm:$0x3]
        %v639 = vunpack.c.0.s8 %v637
        %v640 = vunpack.c.0.s8 %v638
        %v641 = vcvt.s32.f32 %v639
        %v642 = vcvt.s32.f32 %v640
        %v644 = vsel %vm476, %v641, 0
        %v647 = vsel %vm476, %v642, 0
        %649 = vmatprep.subr.mxu0 %v453
        %650 = vmatpush1.msra.mxu0 %v452
        %651 = vmatprep.subr.mxu0 %v457
        %652 = vmatpush1.msra.mxu0 %v456
        %653 = vmatprep.subr.mxu0 0.0
        %654 = vmatpush1.msra.mxu0 0.0
        %655 = vmatprep.subr.mxu0 0.0
        %656 = vmatpush1.msra.mxu0 0.0
        %657 = vmatprep.subr.mxu0 0.0
        %658 = vmatpush1.msra.mxu0 0.0
        %659 = vmatprep.subr.mxu0 0.0
        %660 = vmatpush1.msra.mxu0 0.0
        %661 = vmatprep.subr.mxu0 0.0
        %662 = vmatpush1.msra.mxu0 0.0
        %663 = vmatprep.subr.mxu0 0.0
        %664 = vmatpush1.msra.mxu0 0.0
        %665 = vmatprep.subr.mxu0 0.0
        %666 = vmatpush1.msra.mxu0 0.0
        %667 = vmatprep.subr.mxu0 0.0
        %668 = vmatpush1.msra.mxu0 0.0
        %669 = vmatprep.subr.mxu0 0.0
        %670 = vmatpush1.msra.mxu0 0.0
        %671 = vmatprep.subr.mxu0 0.0
        %672 = vmatpush1.msra.mxu0 0.0
        %673 = vmatprep.subr.mxu0 0.0
        %674 = vmatpush1.msra.mxu0 0.0
        %675 = vmatprep.subr.mxu0 0.0
        %676 = vmatpush1.msra.mxu0 0.0
        %677 = vmatprep.subr.mxu0 0.0
        %678 = vmatpush1.msra.mxu0 0.0
        %679 = vmatprep.subr.mxu0 0.0
        %680 = vmatpush1.msra.mxu0 0.0
        %681 = vmatprep.subr.mxu0 0.0
        %682 = vmatpush1.msra.mxu0 0.0
        %683 = vmatprep.subr.mxu0 0.0
        %684 = vmatpush1.msra.mxu0 0.0
        %685 = vmatprep.subr.mxu0 0.0
        %686 = vmatpush1.msra.mxu0 0.0
        %687 = vmatprep.subr.mxu0 0.0
        %688 = vmatpush1.msra.mxu0 0.0
        %689 = vmatprep.subr.mxu0 0.0
        %690 = vmatpush1.msra.mxu0 0.0
        %691 = vmatprep.subr.mxu0 0.0
        %692 = vmatpush1.msra.mxu0 0.0
        %693 = vmatprep.subr.mxu0 0.0
        %694 = vmatpush1.msra.mxu0 0.0
        %695 = vmatprep.subr.mxu0 0.0
        %696 = vmatpush1.msra.mxu0 0.0
        %697 = vmatprep.subr.mxu0 0.0
        %698 = vmatpush1.msra.mxu0 0.0
        %699 = vmatprep.subr.mxu0 0.0
        %700 = vmatpush1.msra.mxu0 0.0
        %701 = vmatprep.subr.mxu0 0.0
        %702 = vmatpush1.msra.mxu0 0.0
        %703 = vmatprep.subr.mxu0 0.0
        %704 = vmatpush1.msra.mxu0 0.0
        %705 = vmatprep.subr.mxu0 0.0
        %706 = vmatpush1.msra.mxu0 0.0
        %707 = vmatprep.subr.mxu0 0.0
        %708 = vmatpush1.msra.mxu0 0.0
        %709 = vmatprep.subr.mxu0 0.0
        %710 = vmatpush1.msra.mxu0 0.0
        %711 = vmatprep.subr.mxu0 0.0
        %712 = vmatpush1.msra.mxu0 0.0
        %713 = vmatprep.mubr.f32.mxu0 0.0
        %714 = vmatmul.mubr.f32.gmra.mrb[0].mxu0 %v644
        %v715 = vpop.f32.mrb[0].mxu0
        %v716 = vadd.f32 0.0, %v715
        %v717 = vpop.f32.mrb[0].mxu0
        %v718 = vadd.f32 0.0, %v717
        %719 = vmatprep.mubr.f32.mxu0 0.0
        %720 = vmatmul.mubr.f32.gmra.mrb[0].mxu0 %v647
        %v721 = vpop.f32.mrb[0].mxu0
        %v722 = vadd.f32 0.0, %v721
        %v723 = vpop.f32.mrb[0].mxu0
        %v724 = vadd.f32 0.0, %v723
        %725 = vdwg.mxu0
        %726 = vmatprep.subr.mxu0 %v455
        %727 = vmatpush1.msra.mxu0 %v454
        %728 = vmatprep.subr.mxu0 %v459
        %729 = vmatpush1.msra.mxu0 %v458
        %730 = vmatprep.subr.mxu0 0.0
        %731 = vmatpush1.msra.mxu0 0.0
        %732 = vmatprep.subr.mxu0 0.0
        %733 = vmatpush1.msra.mxu0 0.0
        %734 = vmatprep.subr.mxu0 0.0
        %735 = vmatpush1.msra.mxu0 0.0
        %736 = vmatprep.subr.mxu0 0.0
        %737 = vmatpush1.msra.mxu0 0.0
        %738 = vmatprep.subr.mxu0 0.0
        %739 = vmatpush1.msra.mxu0 0.0
        %740 = vmatprep.subr.mxu0 0.0
        %741 = vmatpush1.msra.mxu0 0.0
        %742 = vmatprep.subr.mxu0 0.0
        %743 = vmatpush1.msra.mxu0 0.0
        %744 = vmatprep.subr.mxu0 0.0
        %745 = vmatpush1.msra.mxu0 0.0
        %746 = vmatprep.subr.mxu0 0.0
        %747 = vmatpush1.msra.mxu0 0.0
        %748 = vmatprep.subr.mxu0 0.0
        %749 = vmatpush1.msra.mxu0 0.0
        %750 = vmatprep.subr.mxu0 0.0
        %751 = vmatpush1.msra.mxu0 0.0
        %752 = vmatprep.subr.mxu0 0.0
        %753 = vmatpush1.msra.mxu0 0.0
        %754 = vmatprep.subr.mxu0 0.0
        %755 = vmatpush1.msra.mxu0 0.0
        %756 = vmatprep.subr.mxu0 0.0
        %757 = vmatpush1.msra.mxu0 0.0
        %758 = vmatprep.subr.mxu0 0.0
        %759 = vmatpush1.msra.mxu0 0.0
        %760 = vmatprep.subr.mxu0 0.0
        %761 = vmatpush1.msra.mxu0 0.0
        %762 = vmatprep.subr.mxu0 0.0
        %763 = vmatpush1.msra.mxu0 0.0
        %764 = vmatprep.subr.mxu0 0.0
        %765 = vmatpush1.msra.mxu0 0.0
        %766 = vmatprep.subr.mxu0 0.0
        %767 = vmatpush1.msra.mxu0 0.0
        %768 = vmatprep.subr.mxu0 0.0
        %769 = vmatpush1.msra.mxu0 0.0
        %770 = vmatprep.subr.mxu0 0.0
        %771 = vmatpush1.msra.mxu0 0.0
        %772 = vmatprep.subr.mxu0 0.0
        %773 = vmatpush1.msra.mxu0 0.0
        %774 = vmatprep.subr.mxu0 0.0
        %775 = vmatpush1.msra.mxu0 0.0
        %776 = vmatprep.subr.mxu0 0.0
        %777 = vmatpush1.msra.mxu0 0.0
        %778 = vmatprep.subr.mxu0 0.0
        %779 = vmatpush1.msra.mxu0 0.0
        %780 = vmatprep.subr.mxu0 0.0
        %781 = vmatpush1.msra.mxu0 0.0
        %782 = vmatprep.subr.mxu0 0.0
        %783 = vmatpush1.msra.mxu0 0.0
        %784 = vmatprep.subr.mxu0 0.0
        %785 = vmatpush1.msra.mxu0 0.0
        %786 = vmatprep.subr.mxu0 0.0
        %787 = vmatpush1.msra.mxu0 0.0
        %788 = vmatprep.subr.mxu0 0.0
        %789 = vmatpush1.msra.mxu0 0.0
        %790 = vmatprep.mubr.f32.mxu0 0.0
        %791 = vmatmul.mubr.f32.gmra.mrb[0].mxu0 %v644
        %v792 = vpop.f32.mrb[0].mxu0
        %v793 = vadd.f32 0.0, %v792
        %v794 = vpop.f32.mrb[0].mxu0
        %v795 = vadd.f32 0.0, %v794
        %796 = vmatprep.mubr.f32.mxu0 0.0
        %797 = vmatmul.mubr.f32.gmra.mrb[0].mxu0 %v647
        %v798 = vpop.f32.mrb[0].mxu0
        %v799 = vadd.f32 0.0, %v798
        %v800 = vpop.f32.mrb[0].mxu0
        %v801 = vadd.f32 0.0, %v800
        %802 = vdwg.mxu0
        %v803 = vld [vmem:[%s337] sm:$0xff]
        %v804 = vld [vmem:[%s337 + $0x8] sm:$0xff]
        %v805 = vld [vmem:[%s337 + $0x10] sm:$0xff]
        %v806 = vld [vmem:[%s337 + $0x18] sm:$0xff]
        %v807 = vld [vmem:[%s337 + $0x20] sm:$0xff]
        %v808 = vld [vmem:[%s337 + $0x28] sm:$0xff]
        %v809 = vld [vmem:[%s337 + $0x30] sm:$0xff]
        %v810 = vld [vmem:[%s337 + $0x38] sm:$0xff]
        %v811 = vmul.f32 %v803, %v550
        %v812 = vmul.f32 %v804, %v552
        %v813 = vmul.f32 %v805, %v627
        %v814 = vmul.f32 %v806, %v629
        %v815 = vmul.f32 %v807, %v556
        %v816 = vmul.f32 %v808, %v558
        %v817 = vmul.f32 %v809, %v633
        %v818 = vmul.f32 %v810, %v635
        %819 = vxpose.xlu0.b32.start [1/16] %v468, 128
        %820 = vxpose.xlu0.b32.cont [2/16] %v469, 128
        %821 = vxpose.xlu0.b32.cont [3/16] 0.0, 128
        %822 = vxpose.xlu0.b32.cont [4/16] 0.0, 128
        %823 = vxpose.xlu0.b32.cont [5/16] 0.0, 128
        %824 = vxpose.xlu0.b32.cont [6/16] 0.0, 128
        %825 = vxpose.xlu0.b32.cont [7/16] 0.0, 128
        %826 = vxpose.xlu0.b32.cont [8/16] 0.0, 128
        %827 = vxpose.xlu0.b32.cont [9/16] 0.0, 128
        %828 = vxpose.xlu0.b32.cont [10/16] 0.0, 128
        %829 = vxpose.xlu0.b32.cont [11/16] 0.0, 128
        %830 = vxpose.xlu0.b32.cont [12/16] 0.0, 128
        %831 = vxpose.xlu0.b32.cont [13/16] 0.0, 128
        %832 = vxpose.xlu0.b32.cont [14/16] 0.0, 128
        %833 = vxpose.xlu0.b32.cont [15/16] 0.0, 128
        %834 = vxpose.xlu0.b32.end [16/16] 0.0, 128
        %v835 = vpop.trf.xlu0
        %v836 = vpop.trf.xlu0
        %v837 = vpop.trf.xlu0
        %v838 = vpop.trf.xlu0
        %v839 = vpop.trf.xlu0
        %v840 = vpop.trf.xlu0
        %v841 = vpop.trf.xlu0
        %v842 = vpop.trf.xlu0
        %v843 = vpop.trf.xlu0
        %v844 = vpop.trf.xlu0
        %v845 = vpop.trf.xlu0
        %v846 = vpop.trf.xlu0
        %v847 = vpop.trf.xlu0
        %v848 = vpop.trf.xlu0
        %v849 = vpop.trf.xlu0
        %v850 = vpop.trf.xlu0
        %v852 = vsel %vm476, %v835, 0
        %v855 = vsel %vm476, %v836, 0
        %857 = vmatprep.subr.mxu0 %v812
        %858 = vmatpush1.msra.mxu0 %v811
        %859 = vmatprep.subr.mxu0 %v816
        %860 = vmatpush1.msra.mxu0 %v815
        %861 = vmatprep.subr.mxu0 0.0
        %862 = vmatpush1.msra.mxu0 0.0
        %863 = vmatprep.subr.mxu0 0.0
        %864 = vmatpush1.msra.mxu0 0.0
        %865 = vmatprep.subr.mxu0 0.0
        %866 = vmatpush1.msra.mxu0 0.0
        %867 = vmatprep.subr.mxu0 0.0
        %868 = vmatpush1.msra.mxu0 0.0
        %869 = vmatprep.subr.mxu0 0.0
        %870 = vmatpush1.msra.mxu0 0.0
        %871 = vmatprep.subr.mxu0 0.0
        %872 = vmatpush1.msra.mxu0 0.0
        %873 = vmatprep.subr.mxu0 0.0
        %874 = vmatpush1.msra.mxu0 0.0
        %875 = vmatprep.subr.mxu0 0.0
        %876 = vmatpush1.msra.mxu0 0.0
        %877 = vmatprep.subr.mxu0 0.0
        %878 = vmatpush1.msra.mxu0 0.0
        %879 = vmatprep.subr.mxu0 0.0
        %880 = vmatpush1.msra.mxu0 0.0
        %881 = vmatprep.subr.mxu0 0.0
        %882 = vmatpush1.msra.mxu0 0.0
        %883 = vmatprep.subr.mxu0 0.0
        %884 = vmatpush1.msra.mxu0 0.0
        %885 = vmatprep.subr.mxu0 0.0
        %886 = vmatpush1.msra.mxu0 0.0
        %887 = vmatprep.subr.mxu0 0.0
        %888 = vmatpush1.msra.mxu0 0.0
        %889 = vmatprep.subr.mxu0 0.0
        %890 = vmatpush1.msra.mxu0 0.0
        %891 = vmatprep.subr.mxu0 0.0
        %892 = vmatpush1.msra.mxu0 0.0
        %893 = vmatprep.subr.mxu0 0.0
        %894 = vmatpush1.msra.mxu0 0.0
        %895 = vmatprep.subr.mxu0 0.0
        %896 = vmatpush1.msra.mxu0 0.0
        %897 = vmatprep.subr.mxu0 0.0
        %898 = vmatpush1.msra.mxu0 0.0
        %899 = vmatprep.subr.mxu0 0.0
        %900 = vmatpush1.msra.mxu0 0.0
        %901 = vmatprep.subr.mxu0 0.0
        %902 = vmatpush1.msra.mxu0 0.0
        %903 = vmatprep.subr.mxu0 0.0
        %904 = vmatpush1.msra.mxu0 0.0
        %905 = vmatprep.subr.mxu0 0.0
        %906 = vmatpush1.msra.mxu0 0.0
        %907 = vmatprep.subr.mxu0 0.0
        %908 = vmatpush1.msra.mxu0 0.0
        %909 = vmatprep.subr.mxu0 0.0
        %910 = vmatpush1.msra.mxu0 0.0
        %911 = vmatprep.subr.mxu0 0.0
        %912 = vmatpush1.msra.mxu0 0.0
        %913 = vmatprep.subr.mxu0 0.0
        %914 = vmatpush1.msra.mxu0 0.0
        %915 = vmatprep.subr.mxu0 0.0
        %916 = vmatpush1.msra.mxu0 0.0
        %917 = vmatprep.subr.mxu0 0.0
        %918 = vmatpush1.msra.mxu0 0.0
        %919 = vmatprep.subr.mxu0 0.0
        %920 = vmatpush1.msra.mxu0 0.0
        %921 = vmatprep.mubr.f32.mxu0 0.0
        %922 = vmatmul.mubr.f32.gmra.mrb[0].mxu0 %v852
        %v923 = vpop.f32.mrb[0].mxu0
        %v924 = vadd.f32 0.0, %v923
        %v925 = vpop.f32.mrb[0].mxu0
        %v926 = vadd.f32 0.0, %v925
        %927 = vmatprep.mubr.f32.mxu0 0.0
        %928 = vmatmul.mubr.f32.gmra.mrb[0].mxu0 %v855
        %v929 = vpop.f32.mrb[0].mxu0
        %v930 = vadd.f32 0.0, %v929
        %v931 = vpop.f32.mrb[0].mxu0
        %v932 = vadd.f32 0.0, %v931
        %933 = vdwg.mxu0
        %934 = vmatprep.subr.mxu0 %v814
        %935 = vmatpush1.msra.mxu0 %v813
        %936 = vmatprep.subr.mxu0 %v818
        %937 = vmatpush1.msra.mxu0 %v817
        %938 = vmatprep.subr.mxu0 0.0
        %939 = vmatpush1.msra.mxu0 0.0
        %940 = vmatprep.subr.mxu0 0.0
        %941 = vmatpush1.msra.mxu0 0.0
        %942 = vmatprep.subr.mxu0 0.0
        %943 = vmatpush1.msra.mxu0 0.0
        %944 = vmatprep.subr.mxu0 0.0
        %945 = vmatpush1.msra.mxu0 0.0
        %946 = vmatprep.subr.mxu0 0.0
        %947 = vmatpush1.msra.mxu0 0.0
        %948 = vmatprep.subr.mxu0 0.0
        %949 = vmatpush1.msra.mxu0 0.0
        %950 = vmatprep.subr.mxu0 0.0
        %951 = vmatpush1.msra.mxu0 0.0
        %952 = vmatprep.subr.mxu0 0.0
        %953 = vmatpush1.msra.mxu0 0.0
        %954 = vmatprep.subr.mxu0 0.0
        %955 = vmatpush1.msra.mxu0 0.0
        %956 = vmatprep.subr.mxu0 0.0
        %957 = vmatpush1.msra.mxu0 0.0
        %958 = vmatprep.subr.mxu0 0.0
        %959 = vmatpush1.msra.mxu0 0.0
        %960 = vmatprep.subr.mxu0 0.0
        %961 = vmatpush1.msra.mxu0 0.0
        %962 = vmatprep.subr.mxu0 0.0
        %963 = vmatpush1.msra.mxu0 0.0
        %964 = vmatprep.subr.mxu0 0.0
        %965 = vmatpush1.msra.mxu0 0.0
        %966 = vmatprep.subr.mxu0 0.0
        %967 = vmatpush1.msra.mxu0 0.0
        %968 = vmatprep.subr.mxu0 0.0
        %969 = vmatpush1.msra.mxu0 0.0
        %970 = vmatprep.subr.mxu0 0.0
        %971 = vmatpush1.msra.mxu0 0.0
        %972 = vmatprep.subr.mxu0 0.0
        %973 = vmatpush1.msra.mxu0 0.0
        %974 = vmatprep.subr.mxu0 0.0
        %975 = vmatpush1.msra.mxu0 0.0
        %976 = vmatprep.subr.mxu0 0.0
        %977 = vmatpush1.msra.mxu0 0.0
        %978 = vmatprep.subr.mxu0 0.0
        %979 = vmatpush1.msra.mxu0 0.0
        %980 = vmatprep.subr.mxu0 0.0
        %981 = vmatpush1.msra.mxu0 0.0
        %982 = vmatprep.subr.mxu0 0.0
        %983 = vmatpush1.msra.mxu0 0.0
        %984 = vmatprep.subr.mxu0 0.0
        %985 = vmatpush1.msra.mxu0 0.0
        %986 = vmatprep.subr.mxu0 0.0
        %987 = vmatpush1.msra.mxu0 0.0
        %988 = vmatprep.subr.mxu0 0.0
        %989 = vmatpush1.msra.mxu0 0.0
        %990 = vmatprep.subr.mxu0 0.0
        %991 = vmatpush1.msra.mxu0 0.0
        %992 = vmatprep.subr.mxu0 0.0
        %993 = vmatpush1.msra.mxu0 0.0
        %994 = vmatprep.subr.mxu0 0.0
        %995 = vmatpush1.msra.mxu0 0.0
        %996 = vmatprep.subr.mxu0 0.0
        %997 = vmatpush1.msra.mxu0 0.0
        %998 = vmatprep.mubr.f32.mxu0 0.0
        %999 = vmatmul.mubr.f32.gmra.mrb[0].mxu0 %v852
        %v1000 = vpop.f32.mrb[0].mxu0
        %v1001 = vadd.f32 0.0, %v1000
        %v1002 = vpop.f32.mrb[0].mxu0
        %v1003 = vadd.f32 0.0, %v1002
        %1004 = vmatprep.mubr.f32.mxu0 0.0
        %1005 = vmatmul.mubr.f32.gmra.mrb[0].mxu0 %v855
        %v1006 = vpop.f32.mrb[0].mxu0
        %v1007 = vadd.f32 0.0, %v1006
        %v1008 = vpop.f32.mrb[0].mxu0
        %v1009 = vadd.f32 0.0, %v1008
        %1010 = vdwg.mxu0
        %v1011 = vmul.f32 %v924, %v716
        %v1012 = vmul.f32 %v926, %v718
        %v1013 = vmul.f32 %v1001, %v793
        %v1014 = vmul.f32 %v1003, %v795
        %v1015 = vmul.f32 %v930, %v722
        %v1016 = vmul.f32 %v932, %v724
        %v1017 = vmul.f32 %v1007, %v799
        %v1018 = vmul.f32 %v1009, %v801
        %1019 = vst [vmem:[%s392] sm:$0xff] %v1011
        %1020 = vst [vmem:[%s392 + $0x8] sm:$0xff] %v1012
        %1021 = vst [vmem:[%s392 + $0x10] sm:$0xff] %v1013
        %1022 = vst [vmem:[%s392 + $0x18] sm:$0xff] %v1014
        %1023 = vst [vmem:[%s392 + $0x20] sm:$0xff] %v1015
        %1024 = vst [vmem:[%s392 + $0x28] sm:$0xff] %v1016
        %1025 = vst [vmem:[%s392 + $0x30] sm:$0xff] %v1017
        %1026 = vst [vmem:[%s392 + $0x38] sm:$0xff] %v1018
        %s1027 = sand.u32 %s182, 1
        %s1028 = scalar_lea.sflag [#allocation4], %s1027
        %s1029 = sand.u32 %s182, 1
        %s1030 = smul.addr %s1029, 64
        %s1031 = scalar_lea.vmem [#allocation10], %s1030
        // Predicated region
        $region57: #{tpu_custom_call.1} parent=39 // pred_check
          %p1032 = pneg %p192
        $region58: #{tpu_custom_call.1} parent=39 // pred_check_branch
          %1034 = sbr.rel (%p1032) target = $region60
        $region59: #{tpu_custom_call.1} parent=39 // pred_region
          %s1035 = smul.u32 4, %s33
          %s1037 = ssub.s32 1024, 1024
          %1038 = vsyncadd %s1028, %s1037
          %s1039 = smul.addr %s32, 8
          %s1040 = sadd.s32 %s1035, %s1039
          %s1041 = smul.addr %s1040, 128
          %s1042 = scalar_lea.hbm %s5, %s1041
          %s1043 = sshll.u32 %s1031, 4
          %s1044 = int_to_ptr.vmem [resolvable:$true] %s1043
          %1049 = dma.vmem_to_hbm [thread:$0]  %s1044, 1024, %s1042, %s1028, 512, 512, 32
        $region60: #{tpu_custom_call.1} parent=39 // pred_fallthru
          _
      $region40: #{tpu_custom_call.1} parent=5 // pred_fallthru
        _
      %p1050 = scmp.le.s32.totalorder 2, %s23
      // Predicated region
      $region61: #{tpu_custom_call.1} parent=5 // pred_check
        %p1051 = pneg %p1050
      $region62: #{tpu_custom_call.1} parent=5 // pred_check_branch
        %1053 = sbr.rel (%p1051) target = $region64
      $region63: #{tpu_custom_call.1} parent=5 // pred_region
        %s1054 = ssub.s32 %s23, 2
        // Predicated region
        $region65: #{tpu_custom_call.1} parent=63 // pred_check
          %p1055 = pneg %p198
        $region66: #{tpu_custom_call.1} parent=63 // pred_check_branch
          %1057 = sbr.rel (%p1055) target = $region68
        $region67: #{tpu_custom_call.1} parent=63 // pred_region
          %s1058 = sand.u32 %s183, 1
          %s1059 = scalar_lea.sflag [#allocation4], %s1058
          %s1060 = sand.u32 %s183, 1
          %s1061 = smul.addr %s1060, 64
          %s1062 = scalar_lea.vmem [#allocation10], %s1061
          %1063 = dma.done %s1059, 1024
        $region68: #{tpu_custom_call.1} parent=63 // pred_fallthru
          _
      $region64: #{tpu_custom_call.1} parent=5 // pred_fallthru
        _
    $region6: #{tpu_custom_call.1} parent=1 // loop_footer
      %s27 = sadd.s32 1, %s23
    $region7: #{tpu_custom_call.1} parent=1 // loop_footer_branch
      %22 = sbr.rel target = $region3
    $region8: #{tpu_custom_call.1} parent=1 // loop_exit
      _
    %1064 = vsyncpa [#allocation3], 1
    %s1065 = scalar_lea.sflag [#allocation3], 1
    %1066 = vsyncpa %s1065, 1
    %1067 = vsyncpa [#allocation6], 1
    %s1068 = scalar_lea.sflag [#allocation6], 1
    %1069 = vsyncpa %s1068, 1
    %1070 = vsyncpa [#allocation9], 1
    %s1071 = scalar_lea.sflag [#allocation9], 1
    %1072 = vsyncpa %s1071, 1
    %1073 = vsyncpa [#allocation4], 1
    %s1074 = scalar_lea.sflag [#allocation4], 1
    %1075 = vsyncpa %s1074, 1

</llo_original>
